<compile_context>
chip_gen: v6e
topology: v6e:2x2x1
jax: 0.10.0
libtpu: 0.0.40
codegen_flags: <defaults>
</compile_context>

<pallas_src>
import jax
import jax.numpy as jnp
from jax.experimental import pallas as pl
from jax.experimental.pallas import tpu as pltpu


def _round_up(x, m):
    return ((x + m - 1) // m) * m


def _vmem_capacity_bytes():
    """Physical per-core VMEM; conservative fallback if the query fails."""
    try:
        cap = int(pltpu.get_tpu_info().vmem_capacity_bytes)
        if cap >= 16 * 1024 * 1024:
            return cap
    except Exception:
        pass
    return 64 * 1024 * 1024  # v7x per-TensorCore size (smallest of the three)


def _pick_tile(dim, target, align):
    """Pick a tile size <= target for `dim`.

    Preference order:
      1. the full dimension (if dim <= target)      -> no padding
      2. the largest divisor of dim that is a multiple of `align`
                                                     -> no padding
      3. padded fallback (only hit for awkward, non-aligned large dims)
    Returns (tile, padded_dim).
    """
    if dim <= target:
        return dim, dim
    t = (target // align) * align
    while t >= align:
        if dim % t == 0:
            return t, dim
        t -= align
    tile = max(align, (target // align) * align)
    return tile, _round_up(dim, tile)


def _matmul_kernel_acc(a_ref, b_ref, o_ref, acc_ref):
    # Grid: (M/tm, N/tn, K/tk); K is the reduction axis (last, "arbitrary").
    @pl.when(pl.program_id(2) == 0)
    def _():
        acc_ref[...] = jnp.zeros_like(acc_ref)

    acc_ref[...] += jnp.dot(
        a_ref[...], b_ref[...], preferred_element_type=jnp.float32
    )

    @pl.when(pl.program_id(2) == pl.num_programs(2) - 1)
    def _():
        o_ref[...] = acc_ref[...].astype(o_ref.dtype)


def _matmul_kernel_single_k(a_ref, b_ref, o_ref):
    # K fits in one grid step: no accumulator scratch, no zero-init pass.
    o_ref[...] = jnp.dot(
        a_ref[...], b_ref[...], preferred_element_type=jnp.float32
    ).astype(o_ref.dtype)


def pallas_matmul(a, b, *, out_dtype=None, tm=512, tn=512, tk=1024):
    """Tiled (M,K)x(K,N) matmul on the MXU with f32 accumulation."""
    M, K = a.shape
    K2, N = b.shape
    assert K == K2, "inner dims must match"
    if out_dtype is None:
        out_dtype = jnp.result_type(a.dtype, b.dtype)

    # Tiles: prefer exact divisors so large operands (e.g. the N x N A_hat)
    # never need a physical jnp.pad copy pass in HBM.
    tm, Mp = _pick_tile(M, tm, 8)      # sublane dim of A / out
    tk, Kp = _pick_tile(K, tk, 128)    # lane dim of A, sublane dim of B
    tn, Np = _pick_tile(N, tn, 128)    # lane dim of B / out

    if (Mp, Kp) != (M, K):
        a = jnp.pad(a, ((0, Mp - M), (0, Kp - K)))
    if (Kp, Np) != (K, N):
        b = jnp.pad(b, ((0, Kp - K), (0, Np - N)))

    n_i, n_j, n_k = Mp // tm, Np // tn, Kp // tk

    # Explicit scoped-VMEM budget: double-buffered A/B/out tiles + f32 acc,
    # capped well below the physical per-core VMEM of this TPU generation.
    in_bytes = max(jnp.dtype(a.dtype).itemsize, jnp.dtype(b.dtype).itemsize)
    out_bytes = jnp.dtype(out_dtype).itemsize
    need = ((2 * tm * tk + 2 * tk * tn) * in_bytes
            + tm * tn * 4
            + 2 * tm * tn * out_bytes)
    cap = _vmem_capacity_bytes()
    vmem_limit = int(min(max(32 * 1024 * 1024, 2 * need), 3 * cap // 4))

    if n_k == 1:
        # Whole reduction fits one tile (B is fetched once per j block and
        # stays resident across i iterations since its block index is fixed).
        out = pl.pallas_call(
            _matmul_kernel_single_k,
            out_shape=jax.ShapeDtypeStruct((Mp, Np), out_dtype),
            grid_spec=pltpu.PrefetchScalarGridSpec(
                num_scalar_prefetch=0,
                grid=(n_i, n_j),
                in_specs=[
                    pl.BlockSpec((tm, tk), lambda i, j: (i, 0)),
                    pl.BlockSpec((tk, tn), lambda i, j: (0, j)),
                ],
                out_specs=pl.BlockSpec((tm, tn), lambda i, j: (i, j)),
            ),
            compiler_params=pltpu.CompilerParams(
                dimension_semantics=("parallel", "parallel"),
                vmem_limit_bytes=vmem_limit,
            ),
        )(a, b)
    else:
        out = pl.pallas_call(
            _matmul_kernel_acc,
            out_shape=jax.ShapeDtypeStruct((Mp, Np), out_dtype),
            grid_spec=pltpu.PrefetchScalarGridSpec(
                num_scalar_prefetch=0,
                grid=(n_i, n_j, n_k),
                in_specs=[
                    pl.BlockSpec((tm, tk), lambda i, j, k: (i, k)),
                    pl.BlockSpec((tk, tn), lambda i, j, k: (k, j)),
                ],
                out_specs=pl.BlockSpec((tm, tn), lambda i, j, k: (i, j)),
                scratch_shapes=[pltpu.VMEM((tm, tn), jnp.float32)],
            ),
            compiler_params=pltpu.CompilerParams(
                dimension_semantics=("parallel", "parallel", "arbitrary"),
                vmem_limit_bytes=vmem_limit,
            ),
        )(a, b)

    if (Mp, Np) != (M, N):
        out = out[:M, :N]
    return out


def graph_convolution(a_hat, x, weight):
    """out = A_hat @ (X @ W).  A_hat:(N,N), X:(N,Din), W:(Din,Dout).

    Matches the PyTorch module's f32 semantics: no wrapper-side dtype casts.
    """
    N, N2 = a_hat.shape
    assert N == N2, "A_hat must be square"
    Nx, d_in = x.shape
    assert Nx == N
    d_in_w, d_out = weight.shape
    assert d_in_w == d_in

    out_dtype = x.dtype

    # Pad the output feature dim once to a lane-dense multiple of 128 so both
    # matmuls use unmasked full-lane stores.  Only the small W / XW operands
    # are padded; the N x N adjacency is never copied.
    d_out_p = _round_up(d_out, 128)
    if d_out_p != d_out:
        weight = jnp.pad(weight, ((0, 0), (0, d_out_p - d_out)))

    # 1) XW = X @ W, computed exactly once.  Small operands -> modest tiles.
    xw = pallas_matmul(x, weight, out_dtype=jnp.float32, tm=256, tn=256, tk=512)

    # 2) out = A_hat @ XW: the dominant, memory-bound matmul.  Large tm/tk
    #    tiles cut per-grid-step overhead and XW re-reads; tn capped so the
    #    j axis stays at 1-2 blocks and A_hat is streamed ~once.  For large N
    #    this yields >=2 parallel i blocks (megacore-shardable on v7x).
    out = pallas_matmul(a_hat, xw, out_dtype=out_dtype,
                        tm=512, tk=1024, tn=min(512, d_out_p))

    if d_out_p != d_out:
        out = out[:, :d_out]
    return out


if __name__ == "__main__":
    # Small, deterministic example shapes.
    N = 128        # number of graph nodes
    D_IN = 64      # input feature dim
    D_OUT = 32     # output feature dim (padded to 128 lanes internally)

    key = jax.random.PRNGKey(0)
    k_a, k_x, k_w = jax.random.split(key, 3)

    # Synthetic normalized adjacency (dense, row-stochastic).
    a_raw = jax.random.uniform(k_a, (N, N), dtype=jnp.float32)
    a_hat = a_raw / jnp.sum(a_raw, axis=1, keepdims=True)

    x = jax.random.normal(k_x, (N, D_IN), dtype=jnp.float32)
    # nn.Parameter(torch.FloatTensor(...)) is uninitialized in the reference;
    # initialize deterministically here.
    weight = jax.random.normal(k_w, (D_IN, D_OUT), dtype=jnp.float32) * 0.1

    out = graph_convolution(a_hat, x, weight)
    out = jax.block_until_ready(out)
    assert out.shape == (N, D_OUT)
    assert out.dtype == x.dtype

    # f32 reference: A_hat @ (X @ W).
    ref = jnp.dot(a_hat, jnp.dot(x, weight, preferred_element_type=jnp.float32),
                  preferred_element_type=jnp.float32)
    assert jnp.allclose(out, ref, atol=5e-3, rtol=5e-3), \
        "mismatch vs f32 reference"

    # Also exercise the K-tiled accumulator path (multi-step reduction) with
    # exactly-representable integer-valued inputs (bit-exact vs reference).
    M2, K2, N2 = 256, 384, 256
    ka, kb = jax.random.split(jax.random.PRNGKey(1))
    a2 = jax.random.randint(ka, (M2, K2), -3, 4).astype(jnp.float32)
    b2 = jax.random.randint(kb, (K2, N2), -3, 4).astype(jnp.float32)
    out2 = jax.block_until_ready(pallas_matmul(a2, b2, tm=128, tn=128, tk=128))
    ref2 = jnp.dot(a2, b2, preferred_element_type=jnp.float32)
    assert jnp.allclose(out2, ref2, atol=1e-3, rtol=1e-3), \
        "mismatch on K-tiled accumulator path"

    print("KERNEL_OK")
</pallas_src>

<mosaic_0001>
module attributes {stable_mosaic.version = 11 : i64} {
  func.func @_matmul_kernel_single_k(%arg0: i32, %arg1: i32, %arg2: memref<128x64xf32, #tpu.memory_space<vmem>>, %arg3: memref<64x128xf32, #tpu.memory_space<vmem>>, %arg4: memref<128x128xf32, #tpu.memory_space<vmem>>) attributes {dimension_semantics = [#tpu.dimension_semantics<parallel>, #tpu.dimension_semantics<parallel>], iteration_bounds = array<i64: 1, 1>, scalar_prefetch = 0 : i64, scratch_operands = 0 : i64, tpu.core_type = #tpu.core_type<tc>, window_params = [{transform_indices = @transform_0, window_bounds = array<i64: 128, 64>}, {transform_indices = @transform_1, window_bounds = array<i64: 64, 128>}, {transform_indices = @transform_2, window_bounds = array<i64: 128, 128>}]} {
    %c0 = arith.constant 0 : index
    %c0_0 = arith.constant 0 : index
    %0 = vector.load %arg2[%c0, %c0_0] : memref<128x64xf32, #tpu.memory_space<vmem>>, vector<128x64xf32>
    %c0_1 = arith.constant 0 : index
    %c0_2 = arith.constant 0 : index
    %1 = vector.load %arg3[%c0_1, %c0_2] : memref<64x128xf32, #tpu.memory_space<vmem>>, vector<64x128xf32>
    %cst = arith.constant dense<0.000000e+00> : vector<128x128xf32>
    %2 = tpu.matmul %0, %1, %cst {dimension_numbers = #tpu.dot_dimension_numbers<[1], [0], [0], [1], [0, 0, 1, 1], [], []>} : vector<128x64xf32>, vector<64x128xf32>, vector<128x128xf32> -> vector<128x128xf32>
    %c0_3 = arith.constant 0 : index
    %c0_4 = arith.constant 0 : index
    %3 = vector.load %arg4[%c0_3, %c0_4] : memref<128x128xf32, #tpu.memory_space<vmem>>, vector<128x128xf32>
    tpu.vector_store %arg4[%c0_3, %c0_4], %2 {strides = array<i32>} : memref<128x128xf32, #tpu.memory_space<vmem>>, vector<128x128xf32>,
    return
  }
  func.func @transform_0(%arg0: i32, %arg1: i32) -> (i32, i32) {
    %c0_i32 = arith.constant 0 : i32
    %c0_i32_0 = arith.constant 0 : i32
    return %arg0, %c0_i32 : i32, i32
  }
  func.func @transform_1(%arg0: i32, %arg1: i32) -> (i32, i32) {
    %c0_i32 = arith.constant 0 : i32
    %c0_i32_0 = arith.constant 0 : i32
    return %c0_i32, %arg1 : i32, i32
  }
  func.func @transform_2(%arg0: i32, %arg1: i32) -> (i32, i32) {
    %c0_i32 = arith.constant 0 : i32
    return %arg0, %arg1 : i32, i32
  }
}

</mosaic_0001>

<llo_original>
// kernel: tpu_custom_call.1
$region0: #{tpu_custom_call.1}
  #allocation0 [shape = 'u32[]', space=smem, size = 0x4, offset = 0x4, fixed_abs, tag = 'smem constant byte address 0x4 - core index']
  #allocation1 [shape = 'u32[144,128]{1,0:T(1,128)}', space=vmem, size = 0x12000, scoped, tag = 'internal scratch']
  %s0 = inlined_call_operand.vmem [shape: f32[128,64], index: 0, kind: input, shape index: {}]
  %s1 = inlined_call_operand.vmem [shape: f32[64,128], index: 1, kind: input, shape index: {}]
  %s2 = inlined_call_operand.hbm [shape: f32[128,128], index: 2, kind: output, shape index: {}]
  %s3 = sld [smem:[#allocation0]]
  $region18: #{tpu_custom_call.1} parent=0
    _
  %s5 = ssub.s32 1, %s3
  %s6 = scalar_select 0, %s5, %s3
  $region1: #{tpu_custom_call.1} parent=0
    #allocation2 [shape = 'u8[65536]{0}', space=vmem, size = 0x10000, scoped, tag = 'output window, operand 0, single buffered']
    #allocation3 [shape = 's32[1]{0}', space=sflag, size = 0x4, scoped, tag = 'scoped memory for tpu_custom_call.1']
    %7 = vsyncpa [#allocation3], 0
    // Predicated region
    $region2: #{tpu_custom_call.1} parent=1 // pred_check
      _
    $region3: #{tpu_custom_call.1} parent=1 // pred_check_branch
      %9 = sbr.rel (0) target = $region5
    $region4: #{tpu_custom_call.1} parent=1 // pred_region
      _
    $region5: #{tpu_custom_call.1} parent=1 // pred_fallthru
      _
    // Predicated region
    $region6: #{tpu_custom_call.1} parent=1 // pred_check
      _
    $region7: #{tpu_custom_call.1} parent=1 // pred_check_branch
      %11 = sbr.rel (0) target = $region9
    $region8: #{tpu_custom_call.1} parent=1 // pred_region
      _
    $region9: #{tpu_custom_call.1} parent=1 // pred_fallthru
      _
    %v12 = vld [vmem:[%s0] sm:$0xff]
    %v13 = vld [vmem:[%s0 + $0x8] sm:$0xff]
    %v14 = vld [vmem:[%s0 + $0x10] sm:$0xff]
    %v15 = vld [vmem:[%s0 + $0x18] sm:$0xff]
    %v16 = vld [vmem:[%s0 + $0x20] sm:$0xff]
    %v17 = vld [vmem:[%s0 + $0x28] sm:$0xff]
    %v18 = vld [vmem:[%s0 + $0x30] sm:$0xff]
    %v19 = vld [vmem:[%s0 + $0x38] sm:$0xff]
    %v20 = vld [vmem:[%s0 + $0x40] sm:$0xff]
    %v21 = vld [vmem:[%s0 + $0x48] sm:$0xff]
    %v22 = vld [vmem:[%s0 + $0x50] sm:$0xff]
    %v23 = vld [vmem:[%s0 + $0x58] sm:$0xff]
    %v24 = vld [vmem:[%s0 + $0x60] sm:$0xff]
    %v25 = vld [vmem:[%s0 + $0x68] sm:$0xff]
    %v26 = vld [vmem:[%s0 + $0x70] sm:$0xff]
    %v27 = vld [vmem:[%s0 + $0x78] sm:$0xff]
    %v28 = vld [vmem:[%s1] sm:$0xff]
    %v29 = vld [vmem:[%s1 + $0x8] sm:$0xff]
    %v30 = vld [vmem:[%s1 + $0x10] sm:$0xff]
    %v31 = vld [vmem:[%s1 + $0x18] sm:$0xff]
    %v32 = vld [vmem:[%s1 + $0x20] sm:$0xff]
    %v33 = vld [vmem:[%s1 + $0x28] sm:$0xff]
    %v34 = vld [vmem:[%s1 + $0x30] sm:$0xff]
    %v35 = vld [vmem:[%s1 + $0x38] sm:$0xff]
    %vm36 = vcmask 523264
    %v38 = vsel %vm36, %v12, 0
    %v41 = vsel %vm36, %v13, 0
    %v44 = vsel %vm36, %v14, 0
    %v47 = vsel %vm36, %v15, 0
    %v50 = vsel %vm36, %v16, 0
    %v53 = vsel %vm36, %v17, 0
    %v56 = vsel %vm36, %v18, 0
    %v59 = vsel %vm36, %v19, 0
    %v62 = vsel %vm36, %v20, 0
    %v65 = vsel %vm36, %v21, 0
    %v68 = vsel %vm36, %v22, 0
    %v71 = vsel %vm36, %v23, 0
    %v74 = vsel %vm36, %v24, 0
    %v77 = vsel %vm36, %v25, 0
    %v80 = vsel %vm36, %v26, 0
    %v83 = vsel %vm36, %v27, 0
    %85 = vmatprep.subr.mxu0 0.0
    %86 = vmatpush1.msra.mxu0 0.0
    %87 = vmatprep.subr.mxu0 0.0
    %88 = vmatpush1.msra.mxu0 0.0
    %89 = vmatprep.subr.mxu0 0.0
    %90 = vmatpush1.msra.mxu0 0.0
    %91 = vmatprep.subr.mxu0 0.0
    %92 = vmatpush1.msra.mxu0 0.0
    %93 = vmatprep.subr.mxu0 0.0
    %94 = vmatpush1.msra.mxu0 0.0
    %95 = vmatprep.subr.mxu0 0.0
    %96 = vmatpush1.msra.mxu0 0.0
    %97 = vmatprep.subr.mxu0 0.0
    %98 = vmatpush1.msra.mxu0 0.0
    %99 = vmatprep.subr.mxu0 0.0
    %100 = vmatpush1.msra.mxu0 0.0
    %101 = vmatprep.subr.mxu0 0.0
    %102 = vmatpush1.msra.mxu0 %v35
    %103 = vmatprep.subr.mxu0 0.0
    %104 = vmatpush1.msra.mxu0 %v34
    %105 = vmatprep.subr.mxu0 0.0
    %106 = vmatpush1.msra.mxu0 %v33
    %107 = vmatprep.subr.mxu0 0.0
    %108 = vmatpush1.msra.mxu0 %v32
    %109 = vmatprep.subr.mxu0 0.0
    %110 = vmatpush1.msra.mxu0 %v31
    %111 = vmatprep.subr.mxu0 0.0
    %112 = vmatpush1.msra.mxu0 %v30
    %113 = vmatprep.subr.mxu0 0.0
    %114 = vmatpush1.msra.mxu0 %v29
    %115 = vmatprep.subr.mxu0 0.0
    %116 = vmatpush1.msra.mxu0 %v28
    %117 = vmatprep.subr.mxu0 0.0
    %118 = vmatpush2.msra.mxu0 0.0
    %119 = vmatprep.subr.mxu0 0.0
    %120 = vmatpush2.msra.mxu0 0.0
    %121 = vmatprep.subr.mxu0 0.0
    %122 = vmatpush2.msra.mxu0 0.0
    %123 = vmatprep.subr.mxu0 0.0
    %124 = vmatpush2.msra.mxu0 0.0
    %125 = vmatprep.subr.mxu0 0.0
    %126 = vmatpush2.msra.mxu0 0.0
    %127 = vmatprep.subr.mxu0 0.0
    %128 = vmatpush2.msra.mxu0 0.0
    %129 = vmatprep.subr.mxu0 0.0
    %130 = vmatpush2.msra.mxu0 0.0
    %131 = vmatprep.subr.mxu0 0.0
    %132 = vmatpush2.msra.mxu0 0.0
    %133 = vmatprep.subr.mxu0 0.0
    %134 = vmatpush2.msra.mxu0 0.0
    %135 = vmatprep.subr.mxu0 0.0
    %136 = vmatpush2.msra.mxu0 0.0
    %137 = vmatprep.subr.mxu0 0.0
    %138 = vmatpush2.msra.mxu0 0.0
    %139 = vmatprep.subr.mxu0 0.0
    %140 = vmatpush2.msra.mxu0 0.0
    %141 = vmatprep.subr.mxu0 0.0
    %142 = vmatpush2.msra.mxu0 0.0
    %143 = vmatprep.subr.mxu0 0.0
    %144 = vmatpush2.msra.mxu0 0.0
    %145 = vmatprep.subr.mxu0 0.0
    %146 = vmatpush2.msra.mxu0 0.0
    %147 = vmatprep.subr.mxu0 0.0
    %148 = vmatpush2.msra.mxu0 0.0
    %149 = vmatprep.mubr.f32.mxu0 0.0
    %150 = vmatmul.mubr.f32.gmra.mxu0 %v38
    %v151 = vpop.f32.mrf.mxu0
    %v152 = vadd.f32 0.0, %v151
    %v153 = vpop.f32.mrf.mxu0
    %154 = vmatprep.mubr.f32.mxu0 0.0
    %155 = vmatmul.mubr.f32.gmra.mxu0 %v41
    %v156 = vpop.f32.mrf.mxu0
    %v157 = vadd.f32 0.0, %v156
    %v158 = vpop.f32.mrf.mxu0
    %159 = vmatprep.mubr.f32.mxu0 0.0
    %160 = vmatmul.mubr.f32.gmra.mxu0 %v44
    %v161 = vpop.f32.mrf.mxu0
    %v162 = vadd.f32 0.0, %v161
    %v163 = vpop.f32.mrf.mxu0
    %164 = vmatprep.mubr.f32.mxu0 0.0
    %165 = vmatmul.mubr.f32.gmra.mxu0 %v47
    %v166 = vpop.f32.mrf.mxu0
    %v167 = vadd.f32 0.0, %v166
    %v168 = vpop.f32.mrf.mxu0
    %169 = vmatprep.mubr.f32.mxu0 0.0
    %170 = vmatmul.mubr.f32.gmra.mxu0 %v50
    %v171 = vpop.f32.mrf.mxu0
    %v172 = vadd.f32 0.0, %v171
    %v173 = vpop.f32.mrf.mxu0
    %174 = vmatprep.mubr.f32.mxu0 0.0
    %175 = vmatmul.mubr.f32.gmra.mxu0 %v53
    %v176 = vpop.f32.mrf.mxu0
    %v177 = vadd.f32 0.0, %v176
    %v178 = vpop.f32.mrf.mxu0
    %179 = vmatprep.mubr.f32.mxu0 0.0
    %180 = vmatmul.mubr.f32.gmra.mxu0 %v56
    %v181 = vpop.f32.mrf.mxu0
    %v182 = vadd.f32 0.0, %v181
    %v183 = vpop.f32.mrf.mxu0
    %184 = vmatprep.mubr.f32.mxu0 0.0
    %185 = vmatmul.mubr.f32.gmra.mxu0 %v59
    %v186 = vpop.f32.mrf.mxu0
    %v187 = vadd.f32 0.0, %v186
    %v188 = vpop.f32.mrf.mxu0
    %189 = vmatprep.mubr.f32.mxu0 0.0
    %190 = vmatmul.mubr.f32.gmra.mxu0 %v62
    %v191 = vpop.f32.mrf.mxu0
    %v192 = vadd.f32 0.0, %v191
    %v193 = vpop.f32.mrf.mxu0
    %194 = vmatprep.mubr.f32.mxu0 0.0
    %195 = vmatmul.mubr.f32.gmra.mxu0 %v65
    %v196 = vpop.f32.mrf.mxu0
    %v197 = vadd.f32 0.0, %v196
    %v198 = vpop.f32.mrf.mxu0
    %199 = vmatprep.mubr.f32.mxu0 0.0
    %200 = vmatmul.mubr.f32.gmra.mxu0 %v68
    %v201 = vpop.f32.mrf.mxu0
    %v202 = vadd.f32 0.0, %v201
    %v203 = vpop.f32.mrf.mxu0
    %204 = vmatprep.mubr.f32.mxu0 0.0
    %205 = vmatmul.mubr.f32.gmra.mxu0 %v71
    %v206 = vpop.f32.mrf.mxu0
    %v207 = vadd.f32 0.0, %v206
    %v208 = vpop.f32.mrf.mxu0
    %209 = vmatprep.mubr.f32.mxu0 0.0
    %210 = vmatmul.mubr.f32.gmra.mxu0 %v74
    %v211 = vpop.f32.mrf.mxu0
    %v212 = vadd.f32 0.0, %v211
    %v213 = vpop.f32.mrf.mxu0
    %214 = vmatprep.mubr.f32.mxu0 0.0
    %215 = vmatmul.mubr.f32.gmra.mxu0 %v77
    %v216 = vpop.f32.mrf.mxu0
    %v217 = vadd.f32 0.0, %v216
    %v218 = vpop.f32.mrf.mxu0
    %219 = vmatprep.mubr.f32.mxu0 0.0
    %220 = vmatmul.mubr.f32.gmra.mxu0 %v80
    %v221 = vpop.f32.mrf.mxu0
    %v222 = vadd.f32 0.0, %v221
    %v223 = vpop.f32.mrf.mxu0
    %224 = vmatprep.mubr.f32.mxu0 0.0
    %225 = vmatmul.mubr.f32.gmra.mxu0 %v83
    %v226 = vpop.f32.mrf.mxu0
    %v227 = vadd.f32 0.0, %v226
    %v228 = vpop.f32.mrf.mxu0
    %229 = vdwg.mxu0
    %230 = vst [vmem:[#allocation2] sm:$0xff] %v152
    %231 = vst [vmem:[#allocation2 + $0x8] sm:$0xff] %v157
    %232 = vst [vmem:[#allocation2 + $0x10] sm:$0xff] %v162
    %233 = vst [vmem:[#allocation2 + $0x18] sm:$0xff] %v167
    %234 = vst [vmem:[#allocation2 + $0x20] sm:$0xff] %v172
    %235 = vst [vmem:[#allocation2 + $0x28] sm:$0xff] %v177
    %236 = vst [vmem:[#allocation2 + $0x30] sm:$0xff] %v182
    %237 = vst [vmem:[#allocation2 + $0x38] sm:$0xff] %v187
    %238 = vst [vmem:[#allocation2 + $0x40] sm:$0xff] %v192
    %239 = vst [vmem:[#allocation2 + $0x48] sm:$0xff] %v197
    %240 = vst [vmem:[#allocation2 + $0x50] sm:$0xff] %v202
    %241 = vst [vmem:[#allocation2 + $0x58] sm:$0xff] %v207
    %242 = vst [vmem:[#allocation2 + $0x60] sm:$0xff] %v212
    %243 = vst [vmem:[#allocation2 + $0x68] sm:$0xff] %v217
    %244 = vst [vmem:[#allocation2 + $0x70] sm:$0xff] %v222
    %245 = vst [vmem:[#allocation2 + $0x78] sm:$0xff] %v227
    // Predicated region
    $region10: #{tpu_custom_call.1} parent=1 // pred_check
      _
    $region11: #{tpu_custom_call.1} parent=1 // pred_check_branch
      %247 = sbr.rel (0) target = $region13
    $region12: #{tpu_custom_call.1} parent=1 // pred_region
      %s249 = ssub.s32 2048, 2048
      %250 = vsyncadd [#allocation3], %s249
      %s251 = sshll.u32 [#allocation2], 4
      %s252 = int_to_ptr.vmem [resolvable:$true] %s251
      %257 = dma.vmem_to_hbm [thread:$0]  %s252, 2048, %s2, [#allocation3], 128, 128, 8
    $region13: #{tpu_custom_call.1} parent=1 // pred_fallthru
      _
    // Predicated region
    $region14: #{tpu_custom_call.1} parent=1 // pred_check
      _
    $region15: #{tpu_custom_call.1} parent=1 // pred_check_branch
      %259 = sbr.rel (0) target = $region17
    $region16: #{tpu_custom_call.1} parent=1 // pred_region
      %260 = dma.done [#allocation3], 2048
    $region17: #{tpu_custom_call.1} parent=1 // pred_fallthru
      _
    %261 = vsyncpa [#allocation3], 1

</llo_original>
